<compile_context>
chip_gen: v6e
topology: v6e:2x2x1
jax: 0.10.0
libtpu: 0.0.40
codegen_flags: <defaults>
</compile_context>

<pallas_src>
import math

import jax
import jax.numpy as jnp
from jax.experimental import pallas as pl
from jax.experimental.pallas import tpu as pltpu


def network_teacher_kernel(s_ref, x_ref, o_ref):
    # Single MXU matvec per tile: (TILE_N, L*D) @ (L*D, 1) -> (TILE_N, 1).
    # s_ref already has the 1/sqrt(M)/sqrt(L*D) scale folded in.
    o_ref[...] = jnp.dot(
        x_ref[...].astype(jnp.float32),
        s_ref[...],
        preferred_element_type=jnp.float32,
    )


def _round_up(n, m):
    return ((n + m - 1) // m) * m


def network_teacher_forward(x, fc1U, fc1V, *, tile_n=None):
    """x: (N, L, D), fc1U: (M, D), fc1V: (L, M) -> (N,) f32."""
    N, L, D = x.shape
    M, D2 = fc1U.shape
    L2, M2 = fc1V.shape
    assert D == D2 and L == L2 and M == M2
    LD = L * D

    scale = 1.0 / (math.sqrt(M) * math.sqrt(L * D))

    # Precompute scale-folded S once in the wrapper (f32 accumulation),
    # flattened row-major to match x.reshape(N, L*D). Lane-dense column vector.
    s_vec = (
        jnp.dot(
            fc1V.astype(jnp.float32),
            fc1U.astype(jnp.float32),
            preferred_element_type=jnp.float32,
        )
        * scale
    ).reshape(LD, 1)

    # Lane-dense flatten of x.
    x2d = x.reshape(N, LD)

    # Choose TILE_N so each x block is ~4 MiB (multiple of 8 rows), capped by N.
    if tile_n is None:
        row_bytes = 4 * LD
        tile_n = max(8, min(8192, (4 * 1024 * 1024) // max(row_bytes, 1)))
        tile_n = (tile_n // 8) * 8
    tile_n = min(tile_n, _round_up(N, 8))

    n_pad = _round_up(N, tile_n)
    if n_pad != N:
        # Zero rows contribute nothing to x @ s; sliced off below.
        x2d = jnp.pad(x2d, ((0, n_pad - N), (0, 0)))

    grid = (n_pad // tile_n,)

    out = pl.pallas_call(
        network_teacher_kernel,
        out_shape=jax.ShapeDtypeStruct((n_pad, 1), jnp.float32),
        grid_spec=pl.GridSpec(
            grid=grid,
            in_specs=[
                # s_vec: resident across all tiles.
                pl.BlockSpec((LD, 1), lambda i: (0, 0)),
                # x: one (tile_n, L*D) block per grid step, double-buffered.
                pl.BlockSpec((tile_n, LD), lambda i: (i, 0)),
            ],
            out_specs=pl.BlockSpec((tile_n, 1), lambda i: (i, 0)),
        ),
        compiler_params=pltpu.CompilerParams(
            dimension_semantics=("parallel",),
            vmem_limit_bytes=32 * 1024 * 1024,
        ),
        cost_estimate=pl.CostEstimate(
            flops=2 * n_pad * LD,
            transcendentals=0,
            bytes_accessed=4 * (n_pad * LD + LD + n_pad),
        ),
    )(s_vec, x2d)

    return out[:N, 0]


if __name__ == "__main__":
    # Small shapes consistent with the module: D=16, M=32, L=8, batch N=2.
    D, M, L, N = 16, 32, 8, 2

    key = jax.random.PRNGKey(0)
    k_u, k_v, k_x = jax.random.split(key, 3)

    fc1U = jax.random.normal(k_u, (M, D), dtype=jnp.float32)
    fc1V = jax.random.normal(k_v, (L, M), dtype=jnp.float32)
    x = jax.random.normal(k_x, (N, L, D), dtype=jnp.float32)

    out = network_teacher_forward(x, fc1U, fc1V)
    out = jax.block_until_ready(out)

    # Pure-JAX reference check.
    S = fc1V @ fc1U
    ref = jnp.einsum("ij,nij->n", S, x) / math.sqrt(M) / math.sqrt(L * D)
    assert out.shape == (N,)
    assert jnp.allclose(out, ref, rtol=1e-5, atol=1e-5), (out, ref)

    print("KERNEL_OK")
</pallas_src>

<mosaic_0001>
module attributes {stable_mosaic.version = 11 : i64} {
  func.func @network_teacher_kernel(%arg0: i32, %arg1: memref<128x1xf32, #tpu.memory_space<vmem>>, %arg2: memref<8x128xf32, #tpu.memory_space<vmem>>, %arg3: memref<8x1xf32, #tpu.memory_space<vmem>>) attributes {dimension_semantics = [#tpu.dimension_semantics<parallel>], iteration_bounds = array<i64: 1>, scalar_prefetch = 0 : i64, scratch_operands = 0 : i64, tpu.core_type = #tpu.core_type<tc>, window_params = [{pipeline_mode = #tpu.pipeline_mode<synchronous>, transform_indices = @transform_0, window_bounds = array<i64: 128, 1>}, {transform_indices = @transform_1, window_bounds = array<i64: 8, 128>}, {transform_indices = @transform_2, window_bounds = array<i64: 8, 1>}]} {
    %c0 = arith.constant 0 : index
    %c0_0 = arith.constant 0 : index
    %0 = vector.load %arg2[%c0, %c0_0] : memref<8x128xf32, #tpu.memory_space<vmem>>, vector<8x128xf32>
    %c0_1 = arith.constant 0 : index
    %c0_2 = arith.constant 0 : index
    %1 = vector.load %arg1[%c0_1, %c0_2] : memref<128x1xf32, #tpu.memory_space<vmem>>, vector<128x1xf32>
    %cst = arith.constant dense<0.000000e+00> : vector<8x1xf32>
    %2 = tpu.matmul %0, %1, %cst {dimension_numbers = #tpu.dot_dimension_numbers<[1], [0], [0], [1], [0, 0, 1, 1], [], []>} : vector<8x128xf32>, vector<128x1xf32>, vector<8x1xf32> -> vector<8x1xf32>
    %c0_3 = arith.constant 0 : index
    %c0_4 = arith.constant 0 : index
    %3 = vector.load %arg3[%c0_3, %c0_4] : memref<8x1xf32, #tpu.memory_space<vmem>>, vector<8x1xf32>
    tpu.vector_store %arg3[%c0_3, %c0_4], %2 {strides = array<i32>} : memref<8x1xf32, #tpu.memory_space<vmem>>, vector<8x1xf32>,
    return
  }
  func.func @transform_0(%arg0: i32) -> (i32, i32) {
    %c0_i32 = arith.constant 0 : i32
    %c0_i32_0 = arith.constant 0 : i32
    %c0_i32_1 = arith.constant 0 : i32
    return %c0_i32, %c0_i32_0 : i32, i32
  }
  func.func @transform_1(%arg0: i32) -> (i32, i32) {
    %c0_i32 = arith.constant 0 : i32
    %c0_i32_0 = arith.constant 0 : i32
    return %arg0, %c0_i32 : i32, i32
  }
  func.func @transform_2(%arg0: i32) -> (i32, i32) {
    %c0_i32 = arith.constant 0 : i32
    %c0_i32_0 = arith.constant 0 : i32
    return %arg0, %c0_i32 : i32, i32
  }
}

</mosaic_0001>

<llo_original>
// kernel: tpu_custom_call.1
$region0: #{tpu_custom_call.1}
  #allocation0 [shape = 'u32[]', space=smem, size = 0x4, offset = 0x4, fixed_abs, tag = 'smem constant byte address 0x4 - core index']
  #allocation1 [shape = 'u32[144,128]{1,0:T(1,128)}', space=vmem, size = 0x12000, scoped, tag = 'internal scratch']
  %s0 = inlined_call_operand.vmem [shape: f32[128,1], index: 0, kind: input, shape index: {}]
  %s1 = inlined_call_operand.vmem [shape: f32[8,128], index: 1, kind: input, shape index: {}]
  %s2 = inlined_call_operand.vmem [shape: f32[8,1], index: 2, kind: output, shape index: {}]
  %s3 = sld [smem:[#allocation0]]
  $region18: #{tpu_custom_call.1} parent=0
    _
  %s5 = ssub.s32 1, %s3
  %s6 = scalar_select 0, %s5, %s3
  // Predicated region
  $region2: #{tpu_custom_call.1} parent=0 // pred_check
    _
  $region3: #{tpu_custom_call.1} parent=0 // pred_check_branch
    %8 = sbr.rel (0) target = $region5
  $region4: #{tpu_custom_call.1} parent=0 // pred_region
    _
  $region5: #{tpu_custom_call.1} parent=0 // pred_fallthru
    _
  // Predicated region
  $region6: #{tpu_custom_call.1} parent=0 // pred_check
    _
  $region7: #{tpu_custom_call.1} parent=0 // pred_check_branch
    %10 = sbr.rel (0) target = $region9
  $region8: #{tpu_custom_call.1} parent=0 // pred_region
    _
  $region9: #{tpu_custom_call.1} parent=0 // pred_fallthru
    _
  %v11 = vld [vmem:[%s1] sm:$0xff]
  %v12 = vld [vmem:[%s0] sm:$0xff]
  %v13 = vld [vmem:[%s0 + $0x8] sm:$0xff]
  %v14 = vld [vmem:[%s0 + $0x10] sm:$0xff]
  %v15 = vld [vmem:[%s0 + $0x18] sm:$0xff]
  %v16 = vld [vmem:[%s0 + $0x20] sm:$0xff]
  %v17 = vld [vmem:[%s0 + $0x28] sm:$0xff]
  %v18 = vld [vmem:[%s0 + $0x30] sm:$0xff]
  %v19 = vld [vmem:[%s0 + $0x38] sm:$0xff]
  %v20 = vld [vmem:[%s0 + $0x40] sm:$0xff]
  %v21 = vld [vmem:[%s0 + $0x48] sm:$0xff]
  %v22 = vld [vmem:[%s0 + $0x50] sm:$0xff]
  %v23 = vld [vmem:[%s0 + $0x58] sm:$0xff]
  %v24 = vld [vmem:[%s0 + $0x60] sm:$0xff]
  %v25 = vld [vmem:[%s0 + $0x68] sm:$0xff]
  %v26 = vld [vmem:[%s0 + $0x70] sm:$0xff]
  %v27 = vld [vmem:[%s0 + $0x78] sm:$0xff]
  %28 = vmatprep.subr.mxu0 0.0
  %29 = vmatpush1.msra.mxu0 %v27
  %30 = vmatprep.subr.mxu0 0.0
  %31 = vmatpush1.msra.mxu0 %v26
  %32 = vmatprep.subr.mxu0 0.0
  %33 = vmatpush1.msra.mxu0 %v25
  %34 = vmatprep.subr.mxu0 0.0
  %35 = vmatpush1.msra.mxu0 %v24
  %36 = vmatprep.subr.mxu0 0.0
  %37 = vmatpush1.msra.mxu0 %v23
  %38 = vmatprep.subr.mxu0 0.0
  %39 = vmatpush1.msra.mxu0 %v22
  %40 = vmatprep.subr.mxu0 0.0
  %41 = vmatpush1.msra.mxu0 %v21
  %42 = vmatprep.subr.mxu0 0.0
  %43 = vmatpush1.msra.mxu0 %v20
  %44 = vmatprep.subr.mxu0 0.0
  %45 = vmatpush1.msra.mxu0 %v19
  %46 = vmatprep.subr.mxu0 0.0
  %47 = vmatpush1.msra.mxu0 %v18
  %48 = vmatprep.subr.mxu0 0.0
  %49 = vmatpush1.msra.mxu0 %v17
  %50 = vmatprep.subr.mxu0 0.0
  %51 = vmatpush1.msra.mxu0 %v16
  %52 = vmatprep.subr.mxu0 0.0
  %53 = vmatpush1.msra.mxu0 %v15
  %54 = vmatprep.subr.mxu0 0.0
  %55 = vmatpush1.msra.mxu0 %v14
  %56 = vmatprep.subr.mxu0 0.0
  %57 = vmatpush1.msra.mxu0 %v13
  %58 = vmatprep.subr.mxu0 0.0
  %59 = vmatpush1.msra.mxu0 %v12
  %60 = vmatprep.subr.mxu0 0.0
  %61 = vmatpush2.msra.mxu0 0.0
  %62 = vmatprep.subr.mxu0 0.0
  %63 = vmatpush2.msra.mxu0 0.0
  %64 = vmatprep.subr.mxu0 0.0
  %65 = vmatpush2.msra.mxu0 0.0
  %66 = vmatprep.subr.mxu0 0.0
  %67 = vmatpush2.msra.mxu0 0.0
  %68 = vmatprep.subr.mxu0 0.0
  %69 = vmatpush2.msra.mxu0 0.0
  %70 = vmatprep.subr.mxu0 0.0
  %71 = vmatpush2.msra.mxu0 0.0
  %72 = vmatprep.subr.mxu0 0.0
  %73 = vmatpush2.msra.mxu0 0.0
  %74 = vmatprep.subr.mxu0 0.0
  %75 = vmatpush2.msra.mxu0 0.0
  %76 = vmatprep.subr.mxu0 0.0
  %77 = vmatpush2.msra.mxu0 0.0
  %78 = vmatprep.subr.mxu0 0.0
  %79 = vmatpush2.msra.mxu0 0.0
  %80 = vmatprep.subr.mxu0 0.0
  %81 = vmatpush2.msra.mxu0 0.0
  %82 = vmatprep.subr.mxu0 0.0
  %83 = vmatpush2.msra.mxu0 0.0
  %84 = vmatprep.subr.mxu0 0.0
  %85 = vmatpush2.msra.mxu0 0.0
  %86 = vmatprep.subr.mxu0 0.0
  %87 = vmatpush2.msra.mxu0 0.0
  %88 = vmatprep.subr.mxu0 0.0
  %89 = vmatpush2.msra.mxu0 0.0
  %90 = vmatprep.subr.mxu0 0.0
  %91 = vmatpush2.msra.mxu0 0.0
  %92 = vmatprep.mubr.f32.mxu0 0.0
  %93 = vmatmul.mubr.f32.gmra.mxu0 %v11
  %v94 = vpop.f32.mrf.mxu0
  %v95 = vadd.f32 0.0, %v94
  %v96 = vpop.f32.mrf.mxu0
  %97 = vdwg.mxu0
  %vm98 = vcmask 7168
  %99 = vst.msk [vmem:[%s2] sm:$0xff] %vm98, %v95
  // Predicated region
  $region10: #{tpu_custom_call.1} parent=0 // pred_check
    _
  $region11: #{tpu_custom_call.1} parent=0 // pred_check_branch
    %101 = sbr.rel (0) target = $region13
  $region12: #{tpu_custom_call.1} parent=0 // pred_region
    _
  $region13: #{tpu_custom_call.1} parent=0 // pred_fallthru
    _
  // Predicated region
  $region14: #{tpu_custom_call.1} parent=0 // pred_check
    _
  $region15: #{tpu_custom_call.1} parent=0 // pred_check_branch
    %103 = sbr.rel (0) target = $region17
  $region16: #{tpu_custom_call.1} parent=0 // pred_region
    _
  $region17: #{tpu_custom_call.1} parent=0 // pred_fallthru
    _

</llo_original>
